<compile_context>
chip_gen: v5e
topology: v5e:2x2
jax: 0.10.0
libtpu: 0.0.40
codegen_flags: <defaults>
</compile_context>

<pallas_src>
import functools
import math

import jax
import jax.numpy as jnp
from jax import lax
from jax.experimental import pallas as pl
from jax.experimental.pallas import tpu as pltpu


def _round_up(a: int, m: int) -> int:
    return ((a + m - 1) // m) * m


def _xyz_to_spherical_kernel(xyz_ref, *out_refs, with_r: bool, chunk: int):
    # xyz_ref: (3, R, 128)   out_refs[k]: (R, 128)
    r_rows = xyz_ref.shape[1]
    n_chunks = r_rows // chunk
    out_dtype = out_refs[0].dtype

    def body(j, carry):
        i = pl.multiple_of(j * chunk, chunk)
        x = xyz_ref[0, pl.ds(i, chunk), :].astype(jnp.float32)
        y = xyz_ref[1, pl.ds(i, chunk), :].astype(jnp.float32)
        z = xyz_ref[2, pl.ds(i, chunk), :].astype(jnp.float32)

        s_xy = x * x + y * y
        r_xy = jnp.sqrt(s_xy)

        # theta (polar, [0, pi]) and phi (azimuth, (-pi, pi]).
        out_refs[0][pl.ds(i, chunk), :] = jnp.arctan2(r_xy, z).astype(out_dtype)
        out_refs[1][pl.ds(i, chunk), :] = jnp.arctan2(y, x).astype(out_dtype)
        if with_r:
            out_refs[2][pl.ds(i, chunk), :] = jnp.sqrt(s_xy + z * z).astype(out_dtype)
        return carry

    lax.fori_loop(0, n_chunks, body, 0)


def _forward(xyz, normalize_input, with_r, eps, dim, block_points):
    # `normalize_input` / `eps` accepted for API parity; they are a no-op for
    # the returned quantities (see module-level comment).
    del normalize_input, eps

    ndim = xyz.ndim
    dim = dim % ndim
    assert xyz.shape[dim] == 3, "Cartesian dimension must have size 3"

    in_dtype = xyz.dtype
    if in_dtype in (jnp.bfloat16, jnp.float16):
        work_dtype = in_dtype        # keep narrow dtype through the DMA
        sub = 16                     # (16, 128) tiling for 16-bit dtypes
    else:
        xyz = xyz.astype(jnp.float32)
        work_dtype = jnp.float32
        sub = 8
    out_dtype = work_dtype
    chunk = sub

    # Channel-first layout; moveaxis is a no-op when the Cartesian axis leads.
    xyz_cf = jnp.moveaxis(xyz, dim, 0)
    batch_shape = xyz_cf.shape[1:]
    n = int(math.prod(batch_shape)) if batch_shape else 1
    xyz_cf = xyz_cf.reshape(3, n)

    # ---- block / grid selection --------------------------------------------
    rows_needed = -(-n // 128)
    rows_min = max(sub, _round_up(rows_needed, sub))
    target_rows = max(sub, _round_up(max(1, block_points) // 128, sub))

    if rows_min <= target_rows:
        if rows_min >= 8 * sub:
            # Big enough to be worth feeding both v7x TensorCores.
            n_blocks = 2
            r_rows = _round_up(-(-rows_min // 2), sub)
        else:
            n_blocks = 1
            r_rows = rows_min
    else:
        n_blocks = -(-rows_min // target_rows)
        if n_blocks % 2:
            n_blocks += 1            # even block count balances the two v7x TCs
        r_rows = _round_up(-(-rows_min // n_blocks), sub)

    rows_pad = n_blocks * r_rows
    n_pad = rows_pad * 128

    if n_pad != n:
        xyz_cf = jnp.pad(xyz_cf, ((0, 0), (0, n_pad - n)))
    xyz_3d = xyz_cf.reshape(3, rows_pad, 128)

    n_out = 3 if with_r else 2
    kernel = functools.partial(_xyz_to_spherical_kernel, with_r=with_r, chunk=chunk)

    in_bytes = 3 * jnp.dtype(work_dtype).itemsize
    out_bytes = n_out * jnp.dtype(out_dtype).itemsize
    block_bytes = (in_bytes + out_bytes) * r_rows * 128
    vmem_est = 2 * block_bytes       # double-buffered inputs + outputs
    cp_kwargs = dict(dimension_semantics=("parallel",))
    if vmem_est > (12 << 20):        # stay clear of v5e's 16 MiB scoped default
        cp_kwargs["vmem_limit_bytes"] = int(vmem_est + (4 << 20))

    outs = pl.pallas_call(
        kernel,
        out_shape=tuple(
            jax.ShapeDtypeStruct((rows_pad, 128), out_dtype) for _ in range(n_out)
        ),
        grid=(n_blocks,),
        in_specs=[pl.BlockSpec((3, r_rows, 128), lambda i: (0, i, 0))],
        out_specs=tuple(
            pl.BlockSpec((r_rows, 128), lambda i: (i, 0)) for _ in range(n_out)
        ),
        compiler_params=pltpu.CompilerParams(**cp_kwargs),
        cost_estimate=pl.CostEstimate(
            flops=12 * n_pad,
            transcendentals=(4 if with_r else 3) * n_pad,
            bytes_accessed=(in_bytes + out_bytes) * n_pad,
        ),
    )(xyz_3d)

    # De-pad / reshape; fused by XLA under the surrounding jit.
    results = tuple(o.reshape(-1)[:n].reshape(batch_shape) for o in outs)
    return results  # (theta, phi) or (theta, phi, r)


_forward_jit = jax.jit(_forward, static_argnums=(1, 2, 3, 4, 5))


def xyz_to_spherical(xyz, *, normalize_input=True, with_r=False, eps=1e-14,
                     dim=-1, block_points=131072):
    """Pallas-backed equivalent of equitorch xyz_to_spherical."""
    out = _forward_jit(jnp.asarray(xyz), bool(normalize_input), bool(with_r),
                       float(eps), int(dim), int(block_points))
    return out


class XYZToSpherical:
    """Thin module-style wrapper mirroring the PyTorch module (no parameters)."""

    def __init__(self, normalize_input: bool = True, with_r: bool = False,
                 eps: float = 1e-14, dim: int = -1):
        self.normalize_input = normalize_input
        self.with_r = with_r
        self.eps = eps
        self.dim = dim

    def __call__(self, xyz):
        return xyz_to_spherical(
            xyz,
            normalize_input=self.normalize_input,
            with_r=self.with_r,
            eps=self.eps,
            dim=self.dim,
        )


def _reference(xyz, normalize_input=True, with_r=False, eps=1e-14, dim=-1):
    """Pure-JAX reference with the *original* (normalizing) formulas."""
    xyz = jnp.moveaxis(jnp.asarray(xyz, jnp.float32), dim, -1)
    x, y, z = xyz[..., 0], xyz[..., 1], xyz[..., 2]
    r = jnp.sqrt(x * x + y * y + z * z)
    if normalize_input:
        inv = 1.0 / (r + eps)
        x, y, z = x * inv, y * inv, z * inv
    theta = jnp.arctan2(jnp.sqrt(x * x + y * y), z)
    phi = jnp.arctan2(y, x)
    if with_r:
        return theta, phi, r
    return theta, phi


if __name__ == "__main__":
    key = jax.random.PRNGKey(0)
    xyz = jax.random.normal(key, (2, 128, 3), dtype=jnp.float32)

    # Default config: normalize_input=True, with_r=False.
    mod = XYZToSpherical()
    theta, phi = mod(xyz)
    jax.block_until_ready((theta, phi))
    ref_theta, ref_phi = _reference(xyz)
    assert theta.shape == (2, 128) and phi.shape == (2, 128)
    assert jnp.allclose(theta, ref_theta, atol=1e-5, rtol=1e-5)
    assert jnp.allclose(phi, ref_phi, atol=1e-5, rtol=1e-5)

    # with_r=True path.
    mod_r = XYZToSpherical(with_r=True)
    theta_r, phi_r, r = mod_r(xyz)
    jax.block_until_ready((theta_r, phi_r, r))
    ref_t2, ref_p2, ref_r2 = _reference(xyz, with_r=True)
    assert jnp.allclose(theta_r, ref_t2, atol=1e-5, rtol=1e-5)
    assert jnp.allclose(phi_r, ref_p2, atol=1e-5, rtol=1e-5)
    assert jnp.allclose(r, ref_r2, atol=1e-5, rtol=1e-5)

    # Non-default `dim` + non-multiple-of-128 point count (exercises padding
    # and the channel-axis moveaxis path).
    key2 = jax.random.PRNGKey(1)
    xyz2 = jax.random.normal(key2, (2, 3, 37), dtype=jnp.float32)
    mod_d = XYZToSpherical(with_r=True, dim=1)
    t3, p3, r3 = mod_d(xyz2)
    jax.block_until_ready((t3, p3, r3))
    rt3, rp3, rr3 = _reference(xyz2, with_r=True, dim=1)
    assert t3.shape == (2, 37)
    assert jnp.allclose(t3, rt3, atol=1e-5, rtol=1e-5)
    assert jnp.allclose(p3, rp3, atol=1e-5, rtol=1e-5)
    assert jnp.allclose(r3, rr3, atol=1e-5, rtol=1e-5)

    # Larger input to exercise the multi-block (2-TensorCore) split + padding.
    key3 = jax.random.PRNGKey(2)
    xyz3 = jax.random.normal(key3, (9000, 3), dtype=jnp.float32)
    t4, p4, r4 = xyz_to_spherical(xyz3, with_r=True)
    jax.block_until_ready((t4, p4, r4))
    rt4, rp4, rr4 = _reference(xyz3, with_r=True)
    assert jnp.allclose(t4, rt4, atol=1e-5, rtol=1e-5)
    assert jnp.allclose(p4, rp4, atol=1e-5, rtol=1e-5)
    assert jnp.allclose(r4, rr4, atol=1e-5, rtol=1e-5)

    # Narrow-dtype (bf16) pass-through path: input stays bf16 through the DMA,
    # compute in f32 inside the kernel, outputs in bf16.
    xyz_bf16 = jax.random.normal(key, (4, 200, 3), dtype=jnp.float32).astype(jnp.bfloat16)
    tb, pb = xyz_to_spherical(xyz_bf16)
    jax.block_until_ready((tb, pb))
    rtb, rpb = _reference(xyz_bf16)
    assert tb.dtype == jnp.bfloat16
    assert jnp.allclose(tb.astype(jnp.float32), rtb, atol=3e-2, rtol=3e-2)
    assert jnp.allclose(pb.astype(jnp.float32), rpb, atol=3e-2, rtol=3e-2)

    print("KERNEL_OK")
</pallas_src>

<mosaic_0001>
module attributes {stable_mosaic.version = 11 : i64} {
  func.func @_xyz_to_spherical_kernel(%arg0: i32, %arg1: memref<3x8x128xf32, #tpu.memory_space<vmem>>, %arg2: memref<8x128xf32, #tpu.memory_space<vmem>>, %arg3: memref<8x128xf32, #tpu.memory_space<vmem>>) attributes {dimension_semantics = [#tpu.dimension_semantics<parallel>], iteration_bounds = array<i64: 1>, scalar_prefetch = 0 : i64, scratch_operands = 0 : i64, tpu.core_type = #tpu.core_type<tc>, window_params = [{transform_indices = @transform_0, window_bounds = array<i64: 3, 8, 128>}, {transform_indices = @transform_1, window_bounds = array<i64: 8, 128>}, {transform_indices = @transform_2, window_bounds = array<i64: 8, 128>}]} {
    %c0_i32 = arith.constant 0 : i32
    %c8_i32 = arith.constant 8 : i32
    %0 = arith.muli %c0_i32, %c8_i32 : i32
    %1 = tpu.assume_multiple %0, 8 : i32
    %c0 = arith.constant 0 : index
    %2 = arith.index_cast %1 : i32 to index
    %c0_0 = arith.constant 0 : index
    %3 = vector.load %arg1[%c0, %2, %c0_0] : memref<3x8x128xf32, #tpu.memory_space<vmem>>, vector<1x8x128xf32>
    %4 = vector.shape_cast %3 : vector<1x8x128xf32> to vector<8x128xf32>
    %c1 = arith.constant 1 : index
    %5 = arith.index_cast %1 : i32 to index
    %c0_1 = arith.constant 0 : index
    %6 = vector.load %arg1[%c1, %5, %c0_1] : memref<3x8x128xf32, #tpu.memory_space<vmem>>, vector<1x8x128xf32>
    %7 = vector.shape_cast %6 : vector<1x8x128xf32> to vector<8x128xf32>
    %c2 = arith.constant 2 : index
    %8 = arith.index_cast %1 : i32 to index
    %c0_2 = arith.constant 0 : index
    %9 = vector.load %arg1[%c2, %8, %c0_2] : memref<3x8x128xf32, #tpu.memory_space<vmem>>, vector<1x8x128xf32>
    %10 = vector.shape_cast %9 : vector<1x8x128xf32> to vector<8x128xf32>
    %11 = arith.mulf %4, %4 : vector<8x128xf32>
    %12 = arith.mulf %7, %7 : vector<8x128xf32>
    %13 = arith.addf %11, %12 : vector<8x128xf32>
    %14 = math.sqrt %13 : vector<8x128xf32>
    %15 = math.atan2 %14, %10 : vector<8x128xf32>
    %16 = arith.index_cast %1 : i32 to index
    %c0_3 = arith.constant 0 : index
    %17 = vector.load %arg2[%16, %c0_3] : memref<8x128xf32, #tpu.memory_space<vmem>>, vector<8x128xf32>
    tpu.vector_store %arg2[%16, %c0_3], %15 {strides = array<i32>} : memref<8x128xf32, #tpu.memory_space<vmem>>, vector<8x128xf32>,
    %18 = math.atan2 %7, %4 : vector<8x128xf32>
    %19 = arith.index_cast %1 : i32 to index
    %c0_4 = arith.constant 0 : index
    %20 = vector.load %arg3[%19, %c0_4] : memref<8x128xf32, #tpu.memory_space<vmem>>, vector<8x128xf32>
    tpu.vector_store %arg3[%19, %c0_4], %18 {strides = array<i32>} : memref<8x128xf32, #tpu.memory_space<vmem>>, vector<8x128xf32>,
    %c1_i32 = arith.constant 1 : i32
    return
  }
  func.func @transform_0(%arg0: i32) -> (i32, i32, i32) {
    %c0_i32 = arith.constant 0 : i32
    %c0_i32_0 = arith.constant 0 : i32
    %c0_i32_1 = arith.constant 0 : i32
    return %c0_i32, %arg0, %c0_i32_0 : i32, i32, i32
  }
  func.func @transform_1(%arg0: i32) -> (i32, i32) {
    %c0_i32 = arith.constant 0 : i32
    %c0_i32_0 = arith.constant 0 : i32
    return %arg0, %c0_i32 : i32, i32
  }
  func.func @transform_2(%arg0: i32) -> (i32, i32) {
    %c0_i32 = arith.constant 0 : i32
    %c0_i32_0 = arith.constant 0 : i32
    return %arg0, %c0_i32 : i32, i32
  }
}

</mosaic_0001>

<llo_original>
// kernel: _forward.1
$region0: #{_forward.1}
  #allocation0 [shape = 'u32[]', space=smem, size = 0x4, offset = 0x4, fixed_abs, tag = 'smem constant byte address 0x4 - core index']
  #allocation1 [shape = 'u32[72,128]{1,0:T(1,128)}', space=vmem, size = 0x9000, scoped, tag = 'internal scratch']
  %s0 = inlined_call_operand.vmem [shape: f32[3,8,128], index: 0, kind: input, shape index: {}]
  %s1 = inlined_call_operand.vmem [shape: f32[8,128], index: 1, kind: output, shape index: {0}]
  %s2 = inlined_call_operand.vmem [shape: f32[8,128], index: 2, kind: output, shape index: {1}]
  %3 = xla_tuple %s1, %s2
  %s4 = sld [smem:[#allocation0]]
  $region22: #{_forward.1} parent=0
    _
  %s6 = ssub.s32 1, %s4
  %s7 = scalar_select 0, %s6, %s4
  // Predicated region
  $region2: #{_forward.1} parent=0 // pred_check
    _
  $region3: #{_forward.1} parent=0 // pred_check_branch
    %9 = sbr.rel (0) target = $region5
  $region4: #{_forward.1} parent=0 // pred_region
    _
  $region5: #{_forward.1} parent=0 // pred_fallthru
    _
  %v10 = vld [vmem:[%s0] sm:$0xff]
  %s11 = sadd.s32 0, 8
  %s12 = scalar_lea.vmem %s0, %s11
  %v13 = vld [vmem:[%s12] sm:$0xff]
  %s14 = sadd.s32 0, 16
  %s15 = scalar_lea.vmem %s0, %s14
  %v16 = vld [vmem:[%s15] sm:$0xff]
  %v17 = vmul.f32 %v10, %v10
  %v18 = vmul.f32 %v13, %v13
  %v19 = vadd.f32 %v17, %v18
  %v20 = vrsqrt.pop %v19
  %v21 = vmul.f32 %v20, %v19
  %v22 = vmul.f32 %v21, %v20
  %v23 = vmul.f32 0.5, %v22
  %v24 = vsub.f32 1.5, %v23
  %v25 = vmul.f32 %v20, %v24
  %v26 = vmul.f32 %v19, %v25
  %vm27 = vcmp.eq.f32.partialorder %v19, inf
  %v28 = vsel %vm27, %v19, %v26
  %vm29 = vcmp.eq.f32.partialorder %v19, 0.0
  %v30 = vand.u32 %v19, 2147483648
  %v31 = vsel %vm29, %v30, %v28
  %v32 = vand.u32 2147483647, %v16
  %v33 = vand.u32 2147483647, %v31
  %v34 = vmin.f32 %v32, %v33
  %v35 = vmax.f32 %v32, %v33
  %v36 = vrcp.pop %v35
  %v37 = vmul.f32 %v35, %v36
  %v38 = vsub.f32 1.0, %v37
  %v39 = vmul.f32 %v36, %v38
  %v40 = vadd.f32 %v36, %v39
  %vm41 = vweird.f32 %v35
  %vm42 = vweird.f32 %v36
  %vm43 = vmor %vm41, %vm42
  %v44 = vsel %vm43, %v36, %v40
  %v45 = vand.u32 2147483647, %v35
  %vm46 = vcmp.eq.f32.partialorder %v45, 8.507059e+37
  %v47 = vand.u32 %v35, 2147483648
  %v48 = vor.u32 1.1754944e-38, %v47
  %v49 = vsel %vm46, %v48, %v44
  %v50 = vmul.f32 %v34, %v49
  %v51 = vmul.f32 %v50, %v50
  %v52 = vmul.f32 0.002785687, %v51
  %v53 = vadd.f32 %v52, -0.015866
  %v54 = vmul.f32 %v53, %v51
  %v55 = vadd.f32 %v54, 0.04247222
  %v56 = vmul.f32 %v55, %v51
  %v57 = vadd.f32 %v56, -0.074975304
  %v58 = vmul.f32 %v57, %v51
  %v59 = vadd.f32 %v58, 0.1064488
  %v60 = vmul.f32 %v59, %v51
  %v61 = vadd.f32 %v60, -0.14207031
  %v62 = vmul.f32 %v61, %v51
  %v63 = vadd.f32 %v62, 0.19993454
  %v64 = vmul.f32 %v63, %v51
  %v65 = vadd.f32 %v64, -0.33333147
  %v66 = vmul.f32 %v65, %v51
  %v67 = vmul.f32 %v66, %v50
  %v68 = vadd.f32 %v67, %v50
  %vm69 = vcmp.gt.f32.partialorder %v33, %v32
  %v70 = vsub.f32 1.5707964, %v68
  %v71 = vsel %vm69, %v70, %v68
  %vm72 = vcmp.lt.f32.partialorder %v16, 0.0
  %v73 = vsub.f32 3.1415927, %v71
  %v74 = vsel %vm72, %v73, %v71
  %vm75 = vcmp.lt.s32.totalorder %v16, 0
  %v76 = vsel %vm75, 3.1415927, 0.0
  %vm77 = vcmp.eq.f32.partialorder %v31, 0.0
  %v78 = vsel %vm77, %v76, %v74
  %vm79 = vcmp.ne.f32.partialorder %v16, %v16
  %vm80 = vcmp.ne.f32.partialorder %v31, %v31
  %vm81 = vmor %vm79, %vm80
  %v82 = vsel %vm81, nan, %v78
  %vm83 = vcmp.lt.f32.partialorder %v16, 0.0
  %v84 = vsel %vm83, 2.3561945, 0.7853982
  %vm85 = vcmp.eq.s32.totalorder %v32, inf
  %vm86 = vcmp.eq.s32.totalorder %v33, inf
  %vm87 = vmand %vm85, %vm86
  %v88 = vsel %vm87, %v84, %v82
  %v89 = vand.u32 2147483647, %v88
  %v90 = vand.u32 %v31, 2147483648
  %v91 = vor.u32 %v89, %v90
  %92 = vst [vmem:[%s1] sm:$0xff] %v91
  %v93 = vand.u32 2147483647, %v10
  %v94 = vand.u32 2147483647, %v13
  %v95 = vmin.f32 %v93, %v94
  %v96 = vmax.f32 %v93, %v94
  %v97 = vrcp.pop %v96
  %v98 = vmul.f32 %v96, %v97
  %v99 = vsub.f32 1.0, %v98
  %v100 = vmul.f32 %v97, %v99
  %v101 = vadd.f32 %v97, %v100
  %vm102 = vweird.f32 %v96
  %vm103 = vweird.f32 %v97
  %vm104 = vmor %vm102, %vm103
  %v105 = vsel %vm104, %v97, %v101
  %v106 = vand.u32 2147483647, %v96
  %vm107 = vcmp.eq.f32.partialorder %v106, 8.507059e+37
  %v108 = vand.u32 %v96, 2147483648
  %v109 = vor.u32 1.1754944e-38, %v108
  %v110 = vsel %vm107, %v109, %v105
  %v111 = vmul.f32 %v95, %v110
  %v112 = vmul.f32 %v111, %v111
  %v113 = vmul.f32 0.002785687, %v112
  %v114 = vadd.f32 %v113, -0.015866
  %v115 = vmul.f32 %v114, %v112
  %v116 = vadd.f32 %v115, 0.04247222
  %v117 = vmul.f32 %v116, %v112
  %v118 = vadd.f32 %v117, -0.074975304
  %v119 = vmul.f32 %v118, %v112
  %v120 = vadd.f32 %v119, 0.1064488
  %v121 = vmul.f32 %v120, %v112
  %v122 = vadd.f32 %v121, -0.14207031
  %v123 = vmul.f32 %v122, %v112
  %v124 = vadd.f32 %v123, 0.19993454
  %v125 = vmul.f32 %v124, %v112
  %v126 = vadd.f32 %v125, -0.33333147
  %v127 = vmul.f32 %v126, %v112
  %v128 = vmul.f32 %v127, %v111
  %v129 = vadd.f32 %v128, %v111
  %vm130 = vcmp.gt.f32.partialorder %v94, %v93
  %v131 = vsub.f32 1.5707964, %v129
  %v132 = vsel %vm130, %v131, %v129
  %vm133 = vcmp.lt.f32.partialorder %v10, 0.0
  %v134 = vsub.f32 3.1415927, %v132
  %v135 = vsel %vm133, %v134, %v132
  %vm136 = vcmp.lt.s32.totalorder %v10, 0
  %v137 = vsel %vm136, 3.1415927, 0.0
  %vm138 = vcmp.eq.f32.partialorder %v13, 0.0
  %v139 = vsel %vm138, %v137, %v135
  %vm140 = vcmp.ne.f32.partialorder %v10, %v10
  %vm141 = vcmp.ne.f32.partialorder %v13, %v13
  %vm142 = vmor %vm140, %vm141
  %v143 = vsel %vm142, nan, %v139
  %vm144 = vcmp.lt.f32.partialorder %v10, 0.0
  %v145 = vsel %vm144, 2.3561945, 0.7853982
  %vm146 = vcmp.eq.s32.totalorder %v93, inf
  %vm147 = vcmp.eq.s32.totalorder %v94, inf
  %vm148 = vmand %vm146, %vm147
  %v149 = vsel %vm148, %v145, %v143
  %v150 = vand.u32 2147483647, %v149
  %v151 = vand.u32 %v13, 2147483648
  %v152 = vor.u32 %v150, %v151
  %153 = vst [vmem:[%s2] sm:$0xff] %v152
  // Predicated region
  $region6: #{_forward.1} parent=0 // pred_check
    _
  $region7: #{_forward.1} parent=0 // pred_check_branch
    %155 = sbr.rel (0) target = $region9
  $region8: #{_forward.1} parent=0 // pred_region
    _
  $region9: #{_forward.1} parent=0 // pred_fallthru
    _
  // Predicated region
  $region10: #{_forward.1} parent=0 // pred_check
    _
  $region11: #{_forward.1} parent=0 // pred_check_branch
    %157 = sbr.rel (0) target = $region13
  $region12: #{_forward.1} parent=0 // pred_region
    _
  $region13: #{_forward.1} parent=0 // pred_fallthru
    _
  // Predicated region
  $region14: #{_forward.1} parent=0 // pred_check
    _
  $region15: #{_forward.1} parent=0 // pred_check_branch
    %159 = sbr.rel (0) target = $region17
  $region16: #{_forward.1} parent=0 // pred_region
    _
  $region17: #{_forward.1} parent=0 // pred_fallthru
    _
  // Predicated region
  $region18: #{_forward.1} parent=0 // pred_check
    _
  $region19: #{_forward.1} parent=0 // pred_check_branch
    %161 = sbr.rel (0) target = $region21
  $region20: #{_forward.1} parent=0 // pred_region
    _
  $region21: #{_forward.1} parent=0 // pred_fallthru
    _

</llo_original>
